<compile_context>
chip_gen: v6e
topology: v6e:2x2x1
jax: 0.10.0
libtpu: 0.0.40
codegen_flags: <defaults>
</compile_context>

<pallas_src>
import jax
import jax.numpy as jnp
from jax.experimental import pallas as pl
from jax.experimental.pallas import tpu as pltpu

H1 = 256
H2 = 128


def critic_kernel(s_ref, a_ref, w1s_ref, w1a_ref, b1_ref,
                  w2_ref, b2_ref, w3_ref, b3_ref, o_ref):
    # ---- Layer 1: fused concat -> two bf16 MXU dots summed (f32 accumulate) ----
    # (Merging these two tiny-K dots into one K~32 pass via a packed scratch is a
    #  possible secondary win; kept split to avoid sub-lane-aligned scatter work.)
    h1 = jnp.dot(s_ref[...].astype(jnp.bfloat16), w1s_ref[...],
                 preferred_element_type=jnp.float32)
    h1 = h1 + jnp.dot(a_ref[...].astype(jnp.bfloat16), w1a_ref[...],
                      preferred_element_type=jnp.float32)
    h1 = jnp.maximum(h1 + b1_ref[...], 0.0)          # f32 bias + ReLU (VPU)

    # ---- Layer 2: bf16 MXU dot, f32 accumulate ----
    h2 = jnp.dot(h1.astype(jnp.bfloat16), w2_ref[...],
                 preferred_element_type=jnp.float32)
    h2 = jnp.maximum(h2 + b2_ref[...], 0.0)

    # ---- Layer 3 (out_features = 1), produced lane-dense ----
    # q_row[0, b] = sum_k w3[0, k] * h2[b, k]  ==  (w3 @ h2.T)[0, b]
    # Producing the [1, TILE_B] row directly makes the output store a full
    # lane-dense vst instead of a masked (TILE_B, 1) column store.
    q_row = jnp.dot(w3_ref[...], h2.astype(jnp.bfloat16).T,
                    preferred_element_type=jnp.float32)
    o_ref[...] = (q_row + b3_ref[...]).astype(o_ref.dtype)


def _round_up(x, m):
    return (x + m - 1) // m * m


def _cdiv(a, b):
    return (a + b - 1) // b


def critic_forward(state, action, params, *, tile_b=512):
    """Pallas-backed forward pass of Critic(state_dim, action_dim).

    state: [B, state_dim] f32, action: [B, action_dim] f32  ->  q: [B, 1] f32.
    `tile_b` is the batch tile (sweepable; 512-2048 amortizes per-step overhead).
    """
    w1s, w1a, b1, w2, b2, w3, b3 = params
    B, state_dim = state.shape
    action_dim = action.shape[1]

    # ---- Batch tile selection -------------------------------------------------
    # Lane-dense output tiles must be multiples of 128. Large tiles amortize the
    # ~0.35us per-grid-step overhead; cap so there are >= 2 grid steps when the
    # batch allows it, so both v7x TensorCores get work via the "parallel" axis.
    tile_b = max(128, _round_up(tile_b, 128))
    TILE_B = max(128, min(tile_b, _round_up(B, 128)))
    if _cdiv(B, TILE_B) < 2 and B > 128:
        TILE_B = max(128, _round_up(_cdiv(B, 2), 128))
    num_tiles = _cdiv(B, TILE_B)
    padded_B = num_tiles * TILE_B

    # Large batches are never padded/copied (ragged last block is handled by
    # Pallas; garbage rows are sliced off below). Only tiny batches are padded
    # up to one tile, which costs a few KB at most.
    if B < TILE_B:
        state = jnp.pad(state, ((0, TILE_B - B), (0, 0)))
        action = jnp.pad(action, ((0, TILE_B - B), (0, 0)))

    const = lambda arr: pl.BlockSpec(arr.shape, lambda i: (0, 0))  # VMEM-resident

    # ---- VMEM budget & cost estimate -------------------------------------------
    weight_bytes = sum(int(x.size) * x.dtype.itemsize
                       for x in (w1s, w1a, b1, w2, b2, w3, b3))
    vmem_estimate = (
        2 * 2 * TILE_B * (state_dim + action_dim) * 4   # double-buffered inputs
        + 2 * TILE_B * 4                                # double-buffered output row
        + 2 * weight_bytes                              # double-buffered weights
        + 3 * TILE_B * (H1 + H2) * 4                    # h1/h2 + relayout slack
    )
    vmem_limit = int(min(max(vmem_estimate + (8 << 20), 32 << 20), 64 << 20))

    flops = 2 * B * ((state_dim + action_dim) * H1 + H1 * H2 + H2)
    bytes_accessed = B * (state_dim + action_dim + 1) * 4 + weight_bytes
    cost = pl.CostEstimate(flops=flops, transcendentals=0,
                           bytes_accessed=bytes_accessed)

    out = pl.pallas_call(
        critic_kernel,
        out_shape=jax.ShapeDtypeStruct((1, padded_B), jnp.float32),
        grid=(num_tiles,),
        in_specs=[
            pl.BlockSpec((TILE_B, state_dim), lambda i: (i, 0)),
            pl.BlockSpec((TILE_B, action_dim), lambda i: (i, 0)),
            const(w1s), const(w1a), const(b1),
            const(w2), const(b2), const(w3), const(b3),
        ],
        # Lane-dense output: each grid step writes a full [1, TILE_B] segment.
        out_specs=pl.BlockSpec((1, TILE_B), lambda i: (0, i)),
        compiler_params=pltpu.CompilerParams(
            dimension_semantics=("parallel",),
            vmem_limit_bytes=vmem_limit),
        cost_estimate=cost,
    )(state, action, w1s, w1a, b1, w2, b2, w3, b3)

    # Row b of the batch lives at lane b of the single output row.
    return out.reshape(padded_B, 1)[:B]


def init_critic_params(key, state_dim, action_dim):
    """Init matching nn.Linear's uniform(-1/sqrt(fan_in), 1/sqrt(fan_in)).

    Weights stored as [in, out] bf16 (fc1 split into state/action halves so the
    concat is fused); biases as [1, out] f32; fc_out's weight as a [1, 128] row.
    """
    def linear(key, fan_in, fan_out):
        kw, kb = jax.random.split(key)
        bound = 1.0 / jnp.sqrt(jnp.float32(fan_in))
        w = jax.random.uniform(kw, (fan_in, fan_out), jnp.float32, -bound, bound)
        b = jax.random.uniform(kb, (1, fan_out), jnp.float32, -bound, bound)
        return w, b

    k1, k2, k3 = jax.random.split(key, 3)
    w1, b1 = linear(k1, state_dim + action_dim, H1)
    w2, b2 = linear(k2, H1, H2)
    w3, b3 = linear(k3, H2, 1)

    w1s = w1[:state_dim].astype(jnp.bfloat16)          # [state_dim, 256]
    w1a = w1[state_dim:].astype(jnp.bfloat16)          # [action_dim, 256]
    w2 = w2.astype(jnp.bfloat16)                        # [256, 128]
    w3_row = w3.T.astype(jnp.bfloat16)                  # [1, 128]
    return (w1s, w1a, b1, w2, b2, w3_row, b3)


def critic_reference(state, action, params):
    """Pure-JAX reference replicating the kernel's numerics (bf16 MXU, f32 acc)."""
    w1s, w1a, b1, w2, b2, w3, b3 = params
    h1 = jnp.dot(state.astype(jnp.bfloat16), w1s, preferred_element_type=jnp.float32)
    h1 = h1 + jnp.dot(action.astype(jnp.bfloat16), w1a, preferred_element_type=jnp.float32)
    h1 = jnp.maximum(h1 + b1, 0.0)
    h2 = jnp.dot(h1.astype(jnp.bfloat16), w2, preferred_element_type=jnp.float32)
    h2 = jnp.maximum(h2 + b2, 0.0)
    q = jnp.dot(h2.astype(jnp.bfloat16), w3.T, preferred_element_type=jnp.float32)
    return q + b3


def critic_reference_f32(state, action, params):
    """Pure-f32 reference matching the original PyTorch Critic numerics."""
    w1s, w1a, b1, w2, b2, w3, b3 = params
    x = jnp.concatenate([state, action], axis=1)
    w1 = jnp.concatenate([w1s, w1a], axis=0).astype(jnp.float32)
    h1 = jnp.maximum(x @ w1 + b1, 0.0)
    h2 = jnp.maximum(h1 @ w2.astype(jnp.float32) + b2, 0.0)
    return h2 @ w3.astype(jnp.float32).T + b3


if __name__ == "__main__":
    key = jax.random.PRNGKey(0)
    k_params, k_state, k_action = jax.random.split(key, 3)

    batch = 2
    state_dim = 16
    action_dim = 8

    params = init_critic_params(k_params, state_dim, action_dim)
    state = jax.random.normal(k_state, (batch, state_dim), jnp.float32)
    action = jax.random.normal(k_action, (batch, action_dim), jnp.float32)

    q = critic_forward(state, action, params)
    q = jax.block_until_ready(q)
    assert q.shape == (batch, 1)

    # Tight check against a reference that replicates the kernel's bf16 numerics.
    q_ref = critic_reference(state, action, params)
    assert jnp.allclose(q, q_ref, atol=1e-4, rtol=1e-4)

    # Loose check against a pure-f32 (PyTorch-equivalent) critic: bf16 weights
    # give ~1e-2 relative divergence, acceptable for an RL critic.
    q_f32 = critic_reference_f32(state, action, params)
    assert jnp.allclose(q, q_f32, atol=5e-2, rtol=5e-2)

    print("KERNEL_OK")
</pallas_src>

<mosaic_0001>
module attributes {stable_mosaic.version = 11 : i64} {
  func.func @critic_kernel(%arg0: i32, %arg1: memref<128x16xf32, #tpu.memory_space<vmem>>, %arg2: memref<128x8xf32, #tpu.memory_space<vmem>>, %arg3: memref<16x256xbf16, #tpu.memory_space<vmem>>, %arg4: memref<8x256xbf16, #tpu.memory_space<vmem>>, %arg5: memref<1x256xf32, #tpu.memory_space<vmem>>, %arg6: memref<256x128xbf16, #tpu.memory_space<vmem>>, %arg7: memref<1x128xf32, #tpu.memory_space<vmem>>, %arg8: memref<1x128xbf16, #tpu.memory_space<vmem>>, %arg9: memref<1x1xf32, #tpu.memory_space<vmem>>, %arg10: memref<1x128xf32, #tpu.memory_space<vmem>>) attributes {dimension_semantics = [#tpu.dimension_semantics<parallel>], iteration_bounds = array<i64: 1>, scalar_prefetch = 0 : i64, scratch_operands = 0 : i64, tpu.core_type = #tpu.core_type<tc>, window_params = [{transform_indices = @transform_0, window_bounds = array<i64: 128, 16>}, {transform_indices = @transform_1, window_bounds = array<i64: 128, 8>}, {pipeline_mode = #tpu.pipeline_mode<synchronous>, transform_indices = @transform_2, window_bounds = array<i64: 16, 256>}, {pipeline_mode = #tpu.pipeline_mode<synchronous>, transform_indices = @transform_3, window_bounds = array<i64: 8, 256>}, {pipeline_mode = #tpu.pipeline_mode<synchronous>, transform_indices = @transform_4, window_bounds = array<i64: 1, 256>}, {pipeline_mode = #tpu.pipeline_mode<synchronous>, transform_indices = @transform_5, window_bounds = array<i64: 256, 128>}, {pipeline_mode = #tpu.pipeline_mode<synchronous>, transform_indices = @transform_6, window_bounds = array<i64: 1, 128>}, {pipeline_mode = #tpu.pipeline_mode<synchronous>, transform_indices = @transform_7, window_bounds = array<i64: 1, 128>}, {pipeline_mode = #tpu.pipeline_mode<synchronous>, transform_indices = @transform_8, window_bounds = array<i64: 1, 1>}, {transform_indices = @transform_9, window_bounds = array<i64: 1, 128>}]} {
    %c0 = arith.constant 0 : index
    %c0_0 = arith.constant 0 : index
    %0 = vector.load %arg1[%c0, %c0_0] : memref<128x16xf32, #tpu.memory_space<vmem>>, vector<128x16xf32>
    %1 = arith.truncf %0 : vector<128x16xf32> to vector<128x16xbf16>
    %c0_1 = arith.constant 0 : index
    %c0_2 = arith.constant 0 : index
    %2 = vector.load %arg3[%c0_1, %c0_2] : memref<16x256xbf16, #tpu.memory_space<vmem>>, vector<16x256xbf16>
    %cst = arith.constant dense<0.000000e+00> : vector<128x256xf32>
    %3 = tpu.matmul %1, %2, %cst {dimension_numbers = #tpu.dot_dimension_numbers<[1], [0], [0], [1], [0, 0, 1, 1], [], []>} : vector<128x16xbf16>, vector<16x256xbf16>, vector<128x256xf32> -> vector<128x256xf32>
    %c0_3 = arith.constant 0 : index
    %c0_4 = arith.constant 0 : index
    %4 = vector.load %arg2[%c0_3, %c0_4] : memref<128x8xf32, #tpu.memory_space<vmem>>, vector<128x8xf32>
    %5 = arith.truncf %4 : vector<128x8xf32> to vector<128x8xbf16>
    %c0_5 = arith.constant 0 : index
    %c0_6 = arith.constant 0 : index
    %6 = vector.load %arg4[%c0_5, %c0_6] : memref<8x256xbf16, #tpu.memory_space<vmem>>, vector<8x256xbf16>
    %cst_7 = arith.constant dense<0.000000e+00> : vector<128x256xf32>
    %7 = tpu.matmul %5, %6, %cst_7 {dimension_numbers = #tpu.dot_dimension_numbers<[1], [0], [0], [1], [0, 0, 1, 1], [], []>} : vector<128x8xbf16>, vector<8x256xbf16>, vector<128x256xf32> -> vector<128x256xf32>
    %8 = arith.addf %3, %7 : vector<128x256xf32>
    %c0_8 = arith.constant 0 : index
    %c0_9 = arith.constant 0 : index
    %9 = vector.load %arg5[%c0_8, %c0_9] : memref<1x256xf32, #tpu.memory_space<vmem>>, vector<1x256xf32>
    %10 = vector.broadcast %9 : vector<1x256xf32> to vector<128x256xf32>
    %11 = arith.addf %8, %10 : vector<128x256xf32>
    %cst_10 = arith.constant 0.000000e+00 : f32
    %12 = vector.broadcast %cst_10 : f32 to vector<128x256xf32>
    %13 = arith.maximumf %11, %12 : vector<128x256xf32>
    %14 = arith.truncf %13 : vector<128x256xf32> to vector<128x256xbf16>
    %c0_11 = arith.constant 0 : index
    %c0_12 = arith.constant 0 : index
    %15 = vector.load %arg6[%c0_11, %c0_12] : memref<256x128xbf16, #tpu.memory_space<vmem>>, vector<256x128xbf16>
    %cst_13 = arith.constant dense<0.000000e+00> : vector<128x128xf32>
    %16 = tpu.matmul %14, %15, %cst_13 {dimension_numbers = #tpu.dot_dimension_numbers<[1], [0], [0], [1], [0, 0, 1, 1], [], []>} : vector<128x256xbf16>, vector<256x128xbf16>, vector<128x128xf32> -> vector<128x128xf32>
    %c0_14 = arith.constant 0 : index
    %c0_15 = arith.constant 0 : index
    %17 = vector.load %arg7[%c0_14, %c0_15] : memref<1x128xf32, #tpu.memory_space<vmem>>, vector<1x128xf32>
    %18 = vector.broadcast %17 : vector<1x128xf32> to vector<128x128xf32>
    %19 = arith.addf %16, %18 : vector<128x128xf32>
    %cst_16 = arith.constant 0.000000e+00 : f32
    %20 = vector.broadcast %cst_16 : f32 to vector<128x128xf32>
    %21 = arith.maximumf %19, %20 : vector<128x128xf32>
    %c0_17 = arith.constant 0 : index
    %c0_18 = arith.constant 0 : index
    %22 = vector.load %arg8[%c0_17, %c0_18] : memref<1x128xbf16, #tpu.memory_space<vmem>>, vector<1x128xbf16>
    %23 = arith.truncf %21 : vector<128x128xf32> to vector<128x128xbf16>
    %24 = tpu.transpose %23, [1, 0] : vector<128x128xbf16> -> vector<128x128xbf16>
    %cst_19 = arith.constant dense<0.000000e+00> : vector<1x128xf32>
    %25 = tpu.matmul %22, %24, %cst_19 {dimension_numbers = #tpu.dot_dimension_numbers<[1], [0], [0], [1], [0, 0, 1, 1], [], []>} : vector<1x128xbf16>, vector<128x128xbf16>, vector<1x128xf32> -> vector<1x128xf32>
    %c0_20 = arith.constant 0 : index
    %c0_21 = arith.constant 0 : index
    %26 = vector.load %arg9[%c0_20, %c0_21] : memref<1x1xf32, #tpu.memory_space<vmem>>, vector<1x1xf32>
    %27 = vector.broadcast %26 : vector<1x1xf32> to vector<1x128xf32>
    %28 = arith.addf %25, %27 : vector<1x128xf32>
    %c0_22 = arith.constant 0 : index
    %c0_23 = arith.constant 0 : index
    %29 = vector.load %arg10[%c0_22, %c0_23] : memref<1x128xf32, #tpu.memory_space<vmem>>, vector<1x128xf32>
    tpu.vector_store %arg10[%c0_22, %c0_23], %28 {strides = array<i32>} : memref<1x128xf32, #tpu.memory_space<vmem>>, vector<1x128xf32>,
    return
  }
  func.func @transform_0(%arg0: i32) -> (i32, i32) {
    %c0_i32 = arith.constant 0 : i32
    %c0_i32_0 = arith.constant 0 : i32
    return %arg0, %c0_i32 : i32, i32
  }
  func.func @transform_1(%arg0: i32) -> (i32, i32) {
    %c0_i32 = arith.constant 0 : i32
    %c0_i32_0 = arith.constant 0 : i32
    return %arg0, %c0_i32 : i32, i32
  }
  func.func @transform_2(%arg0: i32) -> (i32, i32) {
    %c0_i32 = arith.constant 0 : i32
    %c0_i32_0 = arith.constant 0 : i32
    %c0_i32_1 = arith.constant 0 : i32
    return %c0_i32, %c0_i32_0 : i32, i32
  }
  func.func @transform_3(%arg0: i32) -> (i32, i32) {
    %c0_i32 = arith.constant 0 : i32
    %c0_i32_0 = arith.constant 0 : i32
    %c0_i32_1 = arith.constant 0 : i32
    return %c0_i32, %c0_i32_0 : i32, i32
  }
  func.func @transform_4(%arg0: i32) -> (i32, i32) {
    %c0_i32 = arith.constant 0 : i32
    %c0_i32_0 = arith.constant 0 : i32
    %c0_i32_1 = arith.constant 0 : i32
    return %c0_i32, %c0_i32_0 : i32, i32
  }
  func.func @transform_5(%arg0: i32) -> (i32, i32) {
    %c0_i32 = arith.constant 0 : i32
    %c0_i32_0 = arith.constant 0 : i32
    %c0_i32_1 = arith.constant 0 : i32
    return %c0_i32, %c0_i32_0 : i32, i32
  }
  func.func @transform_6(%arg0: i32) -> (i32, i32) {
    %c0_i32 = arith.constant 0 : i32
    %c0_i32_0 = arith.constant 0 : i32
    %c0_i32_1 = arith.constant 0 : i32
    return %c0_i32, %c0_i32_0 : i32, i32
  }
  func.func @transform_7(%arg0: i32) -> (i32, i32) {
    %c0_i32 = arith.constant 0 : i32
    %c0_i32_0 = arith.constant 0 : i32
    %c0_i32_1 = arith.constant 0 : i32
    return %c0_i32, %c0_i32_0 : i32, i32
  }
  func.func @transform_8(%arg0: i32) -> (i32, i32) {
    %c0_i32 = arith.constant 0 : i32
    %c0_i32_0 = arith.constant 0 : i32
    %c0_i32_1 = arith.constant 0 : i32
    return %c0_i32, %c0_i32_0 : i32, i32
  }
  func.func @transform_9(%arg0: i32) -> (i32, i32) {
    %c0_i32 = arith.constant 0 : i32
    %c0_i32_0 = arith.constant 0 : i32
    return %c0_i32, %arg0 : i32, i32
  }
}

</mosaic_0001>

<llo_original>
// kernel: tpu_custom_call.1
$region0: #{tpu_custom_call.1}
  #allocation0 [shape = 'u32[]', space=smem, size = 0x4, offset = 0x4, fixed_abs, tag = 'smem constant byte address 0x4 - core index']
  #allocation1 [shape = 'u32[144,128]{1,0:T(1,128)}', space=vmem, size = 0x12000, scoped, tag = 'internal scratch']
  #allocation2 [shape = 'f32[1,1]{1,0:T(1,128)S(1)}', space=vmem, size = 0x200, scoped, tag = 'scoped memory for tpu_custom_call.1']
  %s0 = inlined_call_operand.vmem [shape: f32[128,16], index: 0, kind: input, shape index: {}]
  %s1 = inlined_call_operand.vmem [shape: f32[128,8], index: 1, kind: input, shape index: {}]
  %s2 = inlined_call_operand.vmem [shape: bf16[16,256], index: 2, kind: input, shape index: {}]
  %s3 = inlined_call_operand.vmem [shape: bf16[8,256], index: 3, kind: input, shape index: {}]
  %s4 = inlined_call_operand.vmem [shape: f32[1,256], index: 4, kind: input, shape index: {}]
  %s5 = inlined_call_operand.vmem [shape: bf16[256,128], index: 5, kind: input, shape index: {}]
  %s6 = inlined_call_operand.vmem [shape: f32[1,128], index: 6, kind: input, shape index: {}]
  %s7 = inlined_call_operand.vmem [shape: bf16[1,128], index: 7, kind: input, shape index: {}]
  %s8 = inlined_call_operand.<no memory space> [shape: f32[1,1], index: 8, kind: input, shape index: {}]
  %s9 = inlined_call_operand.hbm [shape: f32[1,128], index: 9, kind: output, shape index: {}]
  %s10 = sld [smem:[#allocation0]]
  $region46: #{tpu_custom_call.1} parent=0
    _
  %s12 = ssub.s32 1, %s10
  %s13 = scalar_select 0, %s12, %s10
  %v14 = vstv %s8
  %15 = vst [vmem:[#allocation2] sm:$0x1] %v14
  $region1: #{tpu_custom_call.1} parent=0
    #allocation3 [shape = 'u8[512]{0}', space=vmem, size = 0x400, scoped, tag = 'output window, operand 0, single buffered']
    #allocation4 [shape = 's32[1]{0}', space=sflag, size = 0x4, scoped, tag = 'scoped memory for tpu_custom_call.1']
    %16 = vsyncpa [#allocation4], 0
    // Predicated region
    $region2: #{tpu_custom_call.1} parent=1 // pred_check
      _
    $region3: #{tpu_custom_call.1} parent=1 // pred_check_branch
      %18 = sbr.rel (0) target = $region5
    $region4: #{tpu_custom_call.1} parent=1 // pred_region
      _
    $region5: #{tpu_custom_call.1} parent=1 // pred_fallthru
      _
    // Predicated region
    $region6: #{tpu_custom_call.1} parent=1 // pred_check
      _
    $region7: #{tpu_custom_call.1} parent=1 // pred_check_branch
      %20 = sbr.rel (0) target = $region9
    $region8: #{tpu_custom_call.1} parent=1 // pred_region
      _
    $region9: #{tpu_custom_call.1} parent=1 // pred_fallthru
      _
    // Predicated region
    $region10: #{tpu_custom_call.1} parent=1 // pred_check
      _
    $region11: #{tpu_custom_call.1} parent=1 // pred_check_branch
      %22 = sbr.rel (0) target = $region13
    $region12: #{tpu_custom_call.1} parent=1 // pred_region
      _
    $region13: #{tpu_custom_call.1} parent=1 // pred_fallthru
      _
    // Predicated region
    $region14: #{tpu_custom_call.1} parent=1 // pred_check
      _
    $region15: #{tpu_custom_call.1} parent=1 // pred_check_branch
      %24 = sbr.rel (0) target = $region17
    $region16: #{tpu_custom_call.1} parent=1 // pred_region
      _
    $region17: #{tpu_custom_call.1} parent=1 // pred_fallthru
      _
    // Predicated region
    $region18: #{tpu_custom_call.1} parent=1 // pred_check
      _
    $region19: #{tpu_custom_call.1} parent=1 // pred_check_branch
      %26 = sbr.rel (0) target = $region21
    $region20: #{tpu_custom_call.1} parent=1 // pred_region
      _
    $region21: #{tpu_custom_call.1} parent=1 // pred_fallthru
      _
    // Predicated region
    $region22: #{tpu_custom_call.1} parent=1 // pred_check
      _
    $region23: #{tpu_custom_call.1} parent=1 // pred_check_branch
      %28 = sbr.rel (0) target = $region25
    $region24: #{tpu_custom_call.1} parent=1 // pred_region
      _
    $region25: #{tpu_custom_call.1} parent=1 // pred_fallthru
      _
    // Predicated region
    $region26: #{tpu_custom_call.1} parent=1 // pred_check
      _
    $region27: #{tpu_custom_call.1} parent=1 // pred_check_branch
      %30 = sbr.rel (0) target = $region29
    $region28: #{tpu_custom_call.1} parent=1 // pred_region
      _
    $region29: #{tpu_custom_call.1} parent=1 // pred_fallthru
      _
    // Predicated region
    $region30: #{tpu_custom_call.1} parent=1 // pred_check
      _
    $region31: #{tpu_custom_call.1} parent=1 // pred_check_branch
      %32 = sbr.rel (0) target = $region33
    $region32: #{tpu_custom_call.1} parent=1 // pred_region
      _
    $region33: #{tpu_custom_call.1} parent=1 // pred_fallthru
      _
    // Predicated region
    $region34: #{tpu_custom_call.1} parent=1 // pred_check
      _
    $region35: #{tpu_custom_call.1} parent=1 // pred_check_branch
      %34 = sbr.rel (0) target = $region37
    $region36: #{tpu_custom_call.1} parent=1 // pred_region
      _
    $region37: #{tpu_custom_call.1} parent=1 // pred_fallthru
      _
    %v36 = vld [vmem:[%s0] sm:$0xff]
    %v37 = vld [vmem:[%s0 + $0x8] sm:$0xff]
    %v38 = vld [vmem:[%s0 + $0x10] sm:$0xff]
    %v39 = vld [vmem:[%s0 + $0x18] sm:$0xff]
    %v40 = vld [vmem:[%s0 + $0x20] sm:$0xff]
    %v41 = vld [vmem:[%s0 + $0x28] sm:$0xff]
    %v42 = vld [vmem:[%s0 + $0x30] sm:$0xff]
    %v43 = vld [vmem:[%s0 + $0x38] sm:$0xff]
    %v44 = vld [vmem:[%s0 + $0x40] sm:$0xff]
    %v45 = vld [vmem:[%s0 + $0x48] sm:$0xff]
    %v46 = vld [vmem:[%s0 + $0x50] sm:$0xff]
    %v47 = vld [vmem:[%s0 + $0x58] sm:$0xff]
    %v48 = vld [vmem:[%s0 + $0x60] sm:$0xff]
    %v49 = vld [vmem:[%s0 + $0x68] sm:$0xff]
    %v50 = vld [vmem:[%s0 + $0x70] sm:$0xff]
    %v51 = vld [vmem:[%s0 + $0x78] sm:$0xff]
    %v52 = vpack.c.bf16 %v37, %v36
    %v53 = vpack.c.bf16 %v39, %v38
    %v54 = vpack.c.bf16 %v41, %v40
    %v55 = vpack.c.bf16 %v43, %v42
    %v56 = vpack.c.bf16 %v45, %v44
    %v57 = vpack.c.bf16 %v47, %v46
    %v58 = vpack.c.bf16 %v49, %v48
    %v59 = vpack.c.bf16 %v51, %v50
    %v60 = vld [vmem:[%s2] sm:$0xff]
    %v61 = vld [vmem:[%s2 + $0x8] sm:$0xff]
    %v62 = vld [vmem:[%s1] sm:$0xff]
    %v63 = vld [vmem:[%s1 + $0x8] sm:$0xff]
    %v64 = vld [vmem:[%s1 + $0x10] sm:$0xff]
    %v65 = vld [vmem:[%s1 + $0x18] sm:$0xff]
    %v66 = vld [vmem:[%s1 + $0x20] sm:$0xff]
    %v67 = vld [vmem:[%s1 + $0x28] sm:$0xff]
    %v68 = vld [vmem:[%s1 + $0x30] sm:$0xff]
    %v69 = vld [vmem:[%s1 + $0x38] sm:$0xff]
    %v70 = vld [vmem:[%s1 + $0x40] sm:$0xff]
    %v71 = vld [vmem:[%s1 + $0x48] sm:$0xff]
    %v72 = vld [vmem:[%s1 + $0x50] sm:$0xff]
    %v73 = vld [vmem:[%s1 + $0x58] sm:$0xff]
    %v74 = vld [vmem:[%s1 + $0x60] sm:$0xff]
    %v75 = vld [vmem:[%s1 + $0x68] sm:$0xff]
    %v76 = vld [vmem:[%s1 + $0x70] sm:$0xff]
    %v77 = vld [vmem:[%s1 + $0x78] sm:$0xff]
    %v78 = vpack.c.bf16 %v63, %v62
    %v79 = vpack.c.bf16 %v65, %v64
    %v80 = vpack.c.bf16 %v67, %v66
    %v81 = vpack.c.bf16 %v69, %v68
    %v82 = vpack.c.bf16 %v71, %v70
    %v83 = vpack.c.bf16 %v73, %v72
    %v84 = vpack.c.bf16 %v75, %v74
    %v85 = vpack.c.bf16 %v77, %v76
    %v86 = vld [vmem:[%s3] sm:$0xff]
    %v88 = vunpack.c.l.b16 %v86
    %v89 = vunpack.c.h.b16 %v86
    %v90 = vpack.c.b16 %v88, %v88
    %v91 = vpack.c.b16 %v89, %v89
    %vm92 = vcmask 64512
    %v94 = vsel %vm92, %v78, 0
    %v97 = vsel %vm92, %v79, 0
    %v100 = vsel %vm92, %v80, 0
    %v103 = vsel %vm92, %v81, 0
    %v106 = vsel %vm92, %v82, 0
    %v109 = vsel %vm92, %v83, 0
    %v112 = vsel %vm92, %v84, 0
    %v115 = vsel %vm92, %v85, 0
    %vm117 = vcmask 1043456
    %v119 = vsel %vm117, %v90, 0
    %v122 = vsel %vm117, %v91, 0
    %124 = vmatprep.subr.bf16.mxu0 0
    %125 = vmatpush1.bf16.msra.mxu0 0
    %126 = vmatprep.subr.bf16.mxu0 0
    %127 = vmatpush1.bf16.msra.mxu0 0
    %128 = vmatprep.subr.bf16.mxu0 0
    %129 = vmatpush1.bf16.msra.mxu0 0
    %130 = vmatprep.subr.bf16.mxu0 0
    %131 = vmatpush1.bf16.msra.mxu0 0
    %132 = vmatprep.subr.bf16.mxu0 0
    %133 = vmatpush1.bf16.msra.mxu0 0
    %134 = vmatprep.subr.bf16.mxu0 0
    %135 = vmatpush1.bf16.msra.mxu0 0
    %136 = vmatprep.subr.bf16.mxu0 0
    %137 = vmatpush1.bf16.msra.mxu0 0
    %138 = vmatprep.subr.bf16.mxu0 %v122
    %139 = vmatpush1.bf16.msra.mxu0 %v119
    %140 = vmatprep.subr.bf16.mxu0 0
    %141 = vmatpush2.bf16.msra.mxu0 0
    %142 = vmatprep.subr.bf16.mxu0 0
    %143 = vmatpush2.bf16.msra.mxu0 0
    %144 = vmatprep.subr.bf16.mxu0 0
    %145 = vmatpush2.bf16.msra.mxu0 0
    %146 = vmatprep.subr.bf16.mxu0 0
    %147 = vmatpush2.bf16.msra.mxu0 0
    %148 = vmatprep.subr.bf16.mxu0 0
    %149 = vmatpush2.bf16.msra.mxu0 0
    %150 = vmatprep.subr.bf16.mxu0 0
    %151 = vmatpush2.bf16.msra.mxu0 0
    %152 = vmatprep.subr.bf16.mxu0 0
    %153 = vmatpush2.bf16.msra.mxu0 0
    %154 = vmatprep.subr.bf16.mxu0 0
    %155 = vmatpush2.bf16.msra.mxu0 0
    %156 = vmatprep.mubr.bf16.mxu0 0
    %157 = vmatmul.mubr.bf16.gmra.mxu0 %v94
    %v158 = vpop.f32.mrf.mxu0
    %v159 = vadd.f32 0.0, %v158
    %v160 = vpop.f32.mrf.mxu0
    %v161 = vadd.f32 0.0, %v160
    %v162 = vpop.f32.mrf.mxu0
    %v163 = vadd.f32 0.0, %v162
    %v164 = vpop.f32.mrf.mxu0
    %v165 = vadd.f32 0.0, %v164
    %166 = vmatprep.mubr.bf16.mxu0 0
    %167 = vmatmul.mubr.bf16.gmra.mxu0 %v97
    %v168 = vpop.f32.mrf.mxu0
    %v169 = vadd.f32 0.0, %v168
    %v170 = vpop.f32.mrf.mxu0
    %v171 = vadd.f32 0.0, %v170
    %v172 = vpop.f32.mrf.mxu0
    %v173 = vadd.f32 0.0, %v172
    %v174 = vpop.f32.mrf.mxu0
    %v175 = vadd.f32 0.0, %v174
    %176 = vmatprep.mubr.bf16.mxu0 0
    %177 = vmatmul.mubr.bf16.gmra.mxu0 %v100
    %v178 = vpop.f32.mrf.mxu0
    %v179 = vadd.f32 0.0, %v178
    %v180 = vpop.f32.mrf.mxu0
    %v181 = vadd.f32 0.0, %v180
    %v182 = vpop.f32.mrf.mxu0
    %v183 = vadd.f32 0.0, %v182
    %v184 = vpop.f32.mrf.mxu0
    %v185 = vadd.f32 0.0, %v184
    %186 = vmatprep.mubr.bf16.mxu0 0
    %187 = vmatmul.mubr.bf16.gmra.mxu0 %v103
    %v188 = vpop.f32.mrf.mxu0
    %v189 = vadd.f32 0.0, %v188
    %v190 = vpop.f32.mrf.mxu0
    %v191 = vadd.f32 0.0, %v190
    %v192 = vpop.f32.mrf.mxu0
    %v193 = vadd.f32 0.0, %v192
    %v194 = vpop.f32.mrf.mxu0
    %v195 = vadd.f32 0.0, %v194
    %196 = vmatprep.mubr.bf16.mxu0 0
    %197 = vmatmul.mubr.bf16.gmra.mxu0 %v106
    %v198 = vpop.f32.mrf.mxu0
    %v199 = vadd.f32 0.0, %v198
    %v200 = vpop.f32.mrf.mxu0
    %v201 = vadd.f32 0.0, %v200
    %v202 = vpop.f32.mrf.mxu0
    %v203 = vadd.f32 0.0, %v202
    %v204 = vpop.f32.mrf.mxu0
    %v205 = vadd.f32 0.0, %v204
    %206 = vmatprep.mubr.bf16.mxu0 0
    %207 = vmatmul.mubr.bf16.gmra.mxu0 %v109
    %v208 = vpop.f32.mrf.mxu0
    %v209 = vadd.f32 0.0, %v208
    %v210 = vpop.f32.mrf.mxu0
    %v211 = vadd.f32 0.0, %v210
    %v212 = vpop.f32.mrf.mxu0
    %v213 = vadd.f32 0.0, %v212
    %v214 = vpop.f32.mrf.mxu0
    %v215 = vadd.f32 0.0, %v214
    %216 = vmatprep.mubr.bf16.mxu0 0
    %217 = vmatmul.mubr.bf16.gmra.mxu0 %v112
    %v218 = vpop.f32.mrf.mxu0
    %v219 = vadd.f32 0.0, %v218
    %v220 = vpop.f32.mrf.mxu0
    %v221 = vadd.f32 0.0, %v220
    %v222 = vpop.f32.mrf.mxu0
    %v223 = vadd.f32 0.0, %v222
    %v224 = vpop.f32.mrf.mxu0
    %v225 = vadd.f32 0.0, %v224
    %226 = vmatprep.mubr.bf16.mxu0 0
    %227 = vmatmul.mubr.bf16.gmra.mxu0 %v115
    %v228 = vpop.f32.mrf.mxu0
    %v229 = vadd.f32 0.0, %v228
    %v230 = vpop.f32.mrf.mxu0
    %v231 = vadd.f32 0.0, %v230
    %v232 = vpop.f32.mrf.mxu0
    %v233 = vadd.f32 0.0, %v232
    %v234 = vpop.f32.mrf.mxu0
    %v235 = vadd.f32 0.0, %v234
    %236 = vdwg.mxu0
    %v239 = vunpack.c.l.b16 %v60
    %v240 = vunpack.c.h.b16 %v60
    %v241 = vunpack.c.l.b16 %v61
    %v242 = vunpack.c.h.b16 %v61
    %v243 = vpack.c.b16 %v241, %v239
    %v244 = vpack.c.b16 %v242, %v240
    %vm247 = vcmask 130048
    %v249 = vsel %vm247, %v52, 0
    %v252 = vsel %vm247, %v53, 0
    %v255 = vsel %vm247, %v54, 0
    %v258 = vsel %vm247, %v55, 0
    %v261 = vsel %vm247, %v56, 0
    %v264 = vsel %vm247, %v57, 0
    %v267 = vsel %vm247, %v58, 0
    %v270 = vsel %vm247, %v59, 0
    %272 = vmatprep.subr.bf16.mxu0 0
    %273 = vmatpush1.bf16.msra.mxu0 0
    %274 = vmatprep.subr.bf16.mxu0 0
    %275 = vmatpush1.bf16.msra.mxu0 0
    %276 = vmatprep.subr.bf16.mxu0 0
    %277 = vmatpush1.bf16.msra.mxu0 0
    %278 = vmatprep.subr.bf16.mxu0 0
    %279 = vmatpush1.bf16.msra.mxu0 0
    %280 = vmatprep.subr.bf16.mxu0 0
    %281 = vmatpush1.bf16.msra.mxu0 0
    %282 = vmatprep.subr.bf16.mxu0 0
    %283 = vmatpush1.bf16.msra.mxu0 0
    %284 = vmatprep.subr.bf16.mxu0 0
    %285 = vmatpush1.bf16.msra.mxu0 0
    %286 = vmatprep.subr.bf16.mxu0 %v244
    %287 = vmatpush1.bf16.msra.mxu0 %v243
    %288 = vmatprep.subr.bf16.mxu0 0
    %289 = vmatpush2.bf16.msra.mxu0 0
    %290 = vmatprep.subr.bf16.mxu0 0
    %291 = vmatpush2.bf16.msra.mxu0 0
    %292 = vmatprep.subr.bf16.mxu0 0
    %293 = vmatpush2.bf16.msra.mxu0 0
    %294 = vmatprep.subr.bf16.mxu0 0
    %295 = vmatpush2.bf16.msra.mxu0 0
    %296 = vmatprep.subr.bf16.mxu0 0
    %297 = vmatpush2.bf16.msra.mxu0 0
    %298 = vmatprep.subr.bf16.mxu0 0
    %299 = vmatpush2.bf16.msra.mxu0 0
    %300 = vmatprep.subr.bf16.mxu0 0
    %301 = vmatpush2.bf16.msra.mxu0 0
    %302 = vmatprep.subr.bf16.mxu0 0
    %303 = vmatpush2.bf16.msra.mxu0 0
    %304 = vmatprep.mubr.bf16.mxu0 0
    %305 = vmatmul.mubr.bf16.gmra.mxu0 %v249
    %v306 = vpop.f32.mrf.mxu0
    %v307 = vadd.f32 %v159, %v306
    %v308 = vpop.f32.mrf.mxu0
    %v309 = vadd.f32 %v161, %v308
    %v310 = vpop.f32.mrf.mxu0
    %v311 = vadd.f32 %v163, %v310
    %v312 = vpop.f32.mrf.mxu0
    %v313 = vadd.f32 %v165, %v312
    %314 = vmatprep.mubr.bf16.mxu0 0
    %315 = vmatmul.mubr.bf16.gmra.mxu0 %v252
    %v316 = vpop.f32.mrf.mxu0
    %v317 = vadd.f32 %v169, %v316
    %v318 = vpop.f32.mrf.mxu0
    %v319 = vadd.f32 %v171, %v318
    %v320 = vpop.f32.mrf.mxu0
    %v321 = vadd.f32 %v173, %v320
    %v322 = vpop.f32.mrf.mxu0
    %v323 = vadd.f32 %v175, %v322
    %324 = vmatprep.mubr.bf16.mxu0 0
    %325 = vmatmul.mubr.bf16.gmra.mxu0 %v255
    %v326 = vpop.f32.mrf.mxu0
    %v327 = vadd.f32 %v179, %v326
    %v328 = vpop.f32.mrf.mxu0
    %v329 = vadd.f32 %v181, %v328
    %v330 = vpop.f32.mrf.mxu0
    %v331 = vadd.f32 %v183, %v330
    %v332 = vpop.f32.mrf.mxu0
    %v333 = vadd.f32 %v185, %v332
    %334 = vmatprep.mubr.bf16.mxu0 0
    %335 = vmatmul.mubr.bf16.gmra.mxu0 %v258
    %v336 = vpop.f32.mrf.mxu0
    %v337 = vadd.f32 %v189, %v336
    %v338 = vpop.f32.mrf.mxu0
    %v339 = vadd.f32 %v191, %v338
    %v340 = vpop.f32.mrf.mxu0
    %v341 = vadd.f32 %v193, %v340
    %v342 = vpop.f32.mrf.mxu0
    %v343 = vadd.f32 %v195, %v342
    %344 = vmatprep.mubr.bf16.mxu0 0
    %345 = vmatmul.mubr.bf16.gmra.mxu0 %v261
    %v346 = vpop.f32.mrf.mxu0
    %v347 = vadd.f32 %v199, %v346
    %v348 = vpop.f32.mrf.mxu0
    %v349 = vadd.f32 %v201, %v348
    %v350 = vpop.f32.mrf.mxu0
    %v351 = vadd.f32 %v203, %v350
    %v352 = vpop.f32.mrf.mxu0
    %v353 = vadd.f32 %v205, %v352
    %354 = vmatprep.mubr.bf16.mxu0 0
    %355 = vmatmul.mubr.bf16.gmra.mxu0 %v264
    %v356 = vpop.f32.mrf.mxu0
    %v357 = vadd.f32 %v209, %v356
    %v358 = vpop.f32.mrf.mxu0
    %v359 = vadd.f32 %v211, %v358
    %v360 = vpop.f32.mrf.mxu0
    %v361 = vadd.f32 %v213, %v360
    %v362 = vpop.f32.mrf.mxu0
    %v363 = vadd.f32 %v215, %v362
    %364 = vmatprep.mubr.bf16.mxu0 0
    %365 = vmatmul.mubr.bf16.gmra.mxu0 %v267
    %v366 = vpop.f32.mrf.mxu0
    %v367 = vadd.f32 %v219, %v366
    %v368 = vpop.f32.mrf.mxu0
    %v369 = vadd.f32 %v221, %v368
    %v370 = vpop.f32.mrf.mxu0
    %v371 = vadd.f32 %v223, %v370
    %v372 = vpop.f32.mrf.mxu0
    %v373 = vadd.f32 %v225, %v372
    %374 = vmatprep.mubr.bf16.mxu0 0
    %375 = vmatmul.mubr.bf16.gmra.mxu0 %v270
    %v376 = vpop.f32.mrf.mxu0
    %v377 = vadd.f32 %v229, %v376
    %v378 = vpop.f32.mrf.mxu0
    %v379 = vadd.f32 %v231, %v378
    %v380 = vpop.f32.mrf.mxu0
    %v381 = vadd.f32 %v233, %v380
    %v382 = vpop.f32.mrf.mxu0
    %v383 = vadd.f32 %v235, %v382
    %384 = vdwg.mxu0
    %v385 = vld [vmem:[%s4] sm:$0x3]
    %v387 = vlaneseq
    %v388 = vshrl.u32 %v387, 7
    %v389 = vsub.s32 0, %v388
    %v390 = vrot.slane %v385, %v389
    %v391 = vlaneseq
    %v392 = vshrl.u32 %v391, 7
    %v393 = vsub.s32 1, %v392
    %v394 = vrot.slane %v385, %v393
    %v397 = vadd.f32 %v307, %v390
    %v398 = vadd.f32 %v309, %v394
    %v399 = vadd.f32 %v311, %v390
    %v400 = vadd.f32 %v313, %v394
    %v401 = vadd.f32 %v317, %v390
    %v402 = vadd.f32 %v319, %v394
    %v403 = vadd.f32 %v321, %v390
    %v404 = vadd.f32 %v323, %v394
    %v405 = vadd.f32 %v327, %v390
    %v406 = vadd.f32 %v329, %v394
    %v407 = vadd.f32 %v331, %v390
    %v408 = vadd.f32 %v333, %v394
    %v409 = vadd.f32 %v337, %v390
    %v410 = vadd.f32 %v339, %v394
    %v411 = vadd.f32 %v341, %v390
    %v412 = vadd.f32 %v343, %v394
    %v413 = vadd.f32 %v347, %v390
    %v414 = vadd.f32 %v349, %v394
    %v415 = vadd.f32 %v351, %v390
    %v416 = vadd.f32 %v353, %v394
    %v417 = vadd.f32 %v357, %v390
    %v418 = vadd.f32 %v359, %v394
    %v419 = vadd.f32 %v361, %v390
    %v420 = vadd.f32 %v363, %v394
    %v421 = vadd.f32 %v367, %v390
    %v422 = vadd.f32 %v369, %v394
    %v423 = vadd.f32 %v371, %v390
    %v424 = vadd.f32 %v373, %v394
    %v425 = vadd.f32 %v377, %v390
    %v426 = vadd.f32 %v379, %v394
    %v427 = vadd.f32 %v381, %v390
    %v428 = vadd.f32 %v383, %v394
    %v429 = vmax.f32 %v397, 0.0
    %v430 = vmax.f32 %v398, 0.0
    %v431 = vmax.f32 %v399, 0.0
    %v432 = vmax.f32 %v400, 0.0
    %v433 = vmax.f32 %v401, 0.0
    %v434 = vmax.f32 %v402, 0.0
    %v435 = vmax.f32 %v403, 0.0
    %v436 = vmax.f32 %v404, 0.0
    %v437 = vmax.f32 %v405, 0.0
    %v438 = vmax.f32 %v406, 0.0
    %v439 = vmax.f32 %v407, 0.0
    %v440 = vmax.f32 %v408, 0.0
    %v441 = vmax.f32 %v409, 0.0
    %v442 = vmax.f32 %v410, 0.0
    %v443 = vmax.f32 %v411, 0.0
    %v444 = vmax.f32 %v412, 0.0
    %v445 = vmax.f32 %v413, 0.0
    %v446 = vmax.f32 %v414, 0.0
    %v447 = vmax.f32 %v415, 0.0
    %v448 = vmax.f32 %v416, 0.0
    %v449 = vmax.f32 %v417, 0.0
    %v450 = vmax.f32 %v418, 0.0
    %v451 = vmax.f32 %v419, 0.0
    %v452 = vmax.f32 %v420, 0.0
    %v453 = vmax.f32 %v421, 0.0
    %v454 = vmax.f32 %v422, 0.0
    %v455 = vmax.f32 %v423, 0.0
    %v456 = vmax.f32 %v424, 0.0
    %v457 = vmax.f32 %v425, 0.0
    %v458 = vmax.f32 %v426, 0.0
    %v459 = vmax.f32 %v427, 0.0
    %v460 = vmax.f32 %v428, 0.0
    %v461 = vpack.c.bf16 %v431, %v429
    %v462 = vpack.c.bf16 %v432, %v430
    %v463 = vpack.c.bf16 %v435, %v433
    %v464 = vpack.c.bf16 %v436, %v434
    %v465 = vpack.c.bf16 %v439, %v437
    %v466 = vpack.c.bf16 %v440, %v438
    %v467 = vpack.c.bf16 %v443, %v441
    %v468 = vpack.c.bf16 %v444, %v442
    %v469 = vpack.c.bf16 %v447, %v445
    %v470 = vpack.c.bf16 %v448, %v446
    %v471 = vpack.c.bf16 %v451, %v449
    %v472 = vpack.c.bf16 %v452, %v450
    %v473 = vpack.c.bf16 %v455, %v453
    %v474 = vpack.c.bf16 %v456, %v454
    %v475 = vpack.c.bf16 %v459, %v457
    %v476 = vpack.c.bf16 %v460, %v458
    %v477 = vld [vmem:[%s5] sm:$0xf]
    %v478 = vld [vmem:[%s5 + $0x4] sm:$0xf]
    %v479 = vld [vmem:[%s5 + $0x8] sm:$0xf]
    %v480 = vld [vmem:[%s5 + $0xc] sm:$0xf]
    %v481 = vld [vmem:[%s5 + $0x10] sm:$0xf]
    %v482 = vld [vmem:[%s5 + $0x14] sm:$0xf]
    %v483 = vld [vmem:[%s5 + $0x18] sm:$0xf]
    %v484 = vld [vmem:[%s5 + $0x1c] sm:$0xf]
    %v485 = vld [vmem:[%s5 + $0x20] sm:$0xf]
    %v486 = vld [vmem:[%s5 + $0x24] sm:$0xf]
    %v487 = vld [vmem:[%s5 + $0x28] sm:$0xf]
    %v488 = vld [vmem:[%s5 + $0x2c] sm:$0xf]
    %v489 = vld [vmem:[%s5 + $0x30] sm:$0xf]
    %v490 = vld [vmem:[%s5 + $0x34] sm:$0xf]
    %v491 = vld [vmem:[%s5 + $0x38] sm:$0xf]
    %v492 = vld [vmem:[%s5 + $0x3c] sm:$0xf]
    %v493 = vld [vmem:[%s5 + $0x40] sm:$0xf]
    %v494 = vld [vmem:[%s5 + $0x44] sm:$0xf]
    %v495 = vld [vmem:[%s5 + $0x48] sm:$0xf]
    %v496 = vld [vmem:[%s5 + $0x4c] sm:$0xf]
    %v497 = vld [vmem:[%s5 + $0x50] sm:$0xf]
    %v498 = vld [vmem:[%s5 + $0x54] sm:$0xf]
    %v499 = vld [vmem:[%s5 + $0x58] sm:$0xf]
    %v500 = vld [vmem:[%s5 + $0x5c] sm:$0xf]
    %v501 = vld [vmem:[%s5 + $0x60] sm:$0xf]
    %v502 = vld [vmem:[%s5 + $0x64] sm:$0xf]
    %v503 = vld [vmem:[%s5 + $0x68] sm:$0xf]
    %v504 = vld [vmem:[%s5 + $0x6c] sm:$0xf]
    %v505 = vld [vmem:[%s5 + $0x70] sm:$0xf]
    %v506 = vld [vmem:[%s5 + $0x74] sm:$0xf]
    %v507 = vld [vmem:[%s5 + $0x78] sm:$0xf]
    %v508 = vld [vmem:[%s5 + $0x7c] sm:$0xf]
    %v509 = vld [vmem:[%s6] sm:$0x1]
    %v511 = vlaneseq
    %v512 = vshrl.u32 %v511, 7
    %v513 = vsub.s32 0, %v512
    %v514 = vrot.slane %v509, %v513
    %v548 = vunpack.c.l.b16 %v477
    %v549 = vunpack.c.l.b16 %v478
    %v550 = vunpack.c.l.b16 %v479
    %v551 = vunpack.c.l.b16 %v480
    %v552 = vunpack.c.l.b16 %v481
    %v553 = vunpack.c.l.b16 %v482
    %v554 = vunpack.c.l.b16 %v483
    %v555 = vunpack.c.l.b16 %v484
    %v556 = vunpack.c.l.b16 %v485
    %v557 = vunpack.c.l.b16 %v486
    %v558 = vunpack.c.l.b16 %v487
    %v559 = vunpack.c.l.b16 %v488
    %v560 = vunpack.c.l.b16 %v489
    %v561 = vunpack.c.l.b16 %v490
    %v562 = vunpack.c.l.b16 %v491
    %v563 = vunpack.c.l.b16 %v492
    %v564 = vunpack.c.l.b16 %v493
    %v565 = vunpack.c.l.b16 %v494
    %v566 = vunpack.c.l.b16 %v495
    %v567 = vunpack.c.l.b16 %v496
    %v568 = vunpack.c.l.b16 %v497
    %v569 = vunpack.c.l.b16 %v498
    %v570 = vunpack.c.l.b16 %v499
    %v571 = vunpack.c.l.b16 %v500
    %v572 = vunpack.c.l.b16 %v501
    %v573 = vunpack.c.l.b16 %v502
    %v574 = vunpack.c.l.b16 %v503
    %v575 = vunpack.c.l.b16 %v504
    %v576 = vunpack.c.l.b16 %v505
    %v577 = vunpack.c.l.b16 %v506
    %v578 = vunpack.c.l.b16 %v507
    %v579 = vunpack.c.l.b16 %v508
    %v580 = vpack.c.b16 %v549, %v548
    %v581 = vpack.c.b16 %v551, %v550
    %v582 = vpack.c.b16 %v553, %v552
    %v583 = vpack.c.b16 %v555, %v554
    %v584 = vpack.c.b16 %v557, %v556
    %v585 = vpack.c.b16 %v559, %v558
    %v586 = vpack.c.b16 %v561, %v560
    %v587 = vpack.c.b16 %v563, %v562
    %v588 = vpack.c.b16 %v565, %v564
    %v589 = vpack.c.b16 %v567, %v566
    %v590 = vpack.c.b16 %v569, %v568
    %v591 = vpack.c.b16 %v571, %v570
    %v592 = vpack.c.b16 %v573, %v572
    %v593 = vpack.c.b16 %v575, %v574
    %v594 = vpack.c.b16 %v577, %v576
    %v595 = vpack.c.b16 %v579, %v578
    %612 = vmatprep.subr.bf16.mxu0 0
    %613 = vmatpush1.bf16.msra.mxu0 %v587
    %614 = vmatprep.subr.bf16.mxu0 0
    %615 = vmatpush1.bf16.msra.mxu0 %v586
    %616 = vmatprep.subr.bf16.mxu0 0
    %617 = vmatpush1.bf16.msra.mxu0 %v585
    %618 = vmatprep.subr.bf16.mxu0 0
    %619 = vmatpush1.bf16.msra.mxu0 %v584
    %620 = vmatprep.subr.bf16.mxu0 0
    %621 = vmatpush1.bf16.msra.mxu0 %v583
    %622 = vmatprep.subr.bf16.mxu0 0
    %623 = vmatpush1.bf16.msra.mxu0 %v582
    %624 = vmatprep.subr.bf16.mxu0 0
    %625 = vmatpush1.bf16.msra.mxu0 %v581
    %626 = vmatprep.subr.bf16.mxu0 0
    %627 = vmatpush1.bf16.msra.mxu0 %v580
    %628 = vmatprep.subr.bf16.mxu0 0
    %629 = vmatpush2.bf16.msra.mxu0 %v595
    %630 = vmatprep.subr.bf16.mxu0 0
    %631 = vmatpush2.bf16.msra.mxu0 %v594
    %632 = vmatprep.subr.bf16.mxu0 0
    %633 = vmatpush2.bf16.msra.mxu0 %v593
    %634 = vmatprep.subr.bf16.mxu0 0
    %635 = vmatpush2.bf16.msra.mxu0 %v592
    %636 = vmatprep.subr.bf16.mxu0 0
    %637 = vmatpush2.bf16.msra.mxu0 %v591
    %638 = vmatprep.subr.bf16.mxu0 0
    %639 = vmatpush2.bf16.msra.mxu0 %v590
    %640 = vmatprep.subr.bf16.mxu0 0
    %641 = vmatpush2.bf16.msra.mxu0 %v589
    %642 = vmatprep.subr.bf16.mxu0 0
    %643 = vmatpush2.bf16.msra.mxu0 %v588
    %644 = vmatprep.mubr.bf16.mxu0 %v462
    %645 = vmatmul.mubr.bf16.gmra.mxu0 %v461
    %v646 = vpop.f32.mrf.mxu0
    %v647 = vadd.f32 %v514, %v646
    %v648 = vpop.f32.mrf.mxu0
    %v649 = vpop.f32.mrf.mxu0
    %v650 = vadd.f32 %v514, %v649
    %v651 = vpop.f32.mrf.mxu0
    %652 = vmatprep.mubr.bf16.mxu0 %v464
    %653 = vmatmul.mubr.bf16.gmra.mxu0 %v463
    %v654 = vpop.f32.mrf.mxu0
    %v655 = vadd.f32 %v514, %v654
    %v656 = vpop.f32.mrf.mxu0
    %v657 = vpop.f32.mrf.mxu0
    %v658 = vadd.f32 %v514, %v657
    %v659 = vpop.f32.mrf.mxu0
    %660 = vmatprep.mubr.bf16.mxu0 %v466
    %661 = vmatmul.mubr.bf16.gmra.mxu0 %v465
    %v662 = vpop.f32.mrf.mxu0
    %v663 = vadd.f32 %v514, %v662
    %v664 = vpop.f32.mrf.mxu0
    %v665 = vpop.f32.mrf.mxu0
    %v666 = vadd.f32 %v514, %v665
    %v667 = vpop.f32.mrf.mxu0
    %668 = vmatprep.mubr.bf16.mxu0 %v468
    %669 = vmatmul.mubr.bf16.gmra.mxu0 %v467
    %v670 = vpop.f32.mrf.mxu0
    %v671 = vadd.f32 %v514, %v670
    %v672 = vpop.f32.mrf.mxu0
    %v673 = vpop.f32.mrf.mxu0
    %v674 = vadd.f32 %v514, %v673
    %v675 = vpop.f32.mrf.mxu0
    %676 = vmatprep.mubr.bf16.mxu0 %v470
    %677 = vmatmul.mubr.bf16.gmra.mxu0 %v469
    %v678 = vpop.f32.mrf.mxu0
    %v679 = vadd.f32 %v514, %v678
    %v680 = vpop.f32.mrf.mxu0
    %v681 = vpop.f32.mrf.mxu0
    %v682 = vadd.f32 %v514, %v681
    %v683 = vpop.f32.mrf.mxu0
    %684 = vmatprep.mubr.bf16.mxu0 %v472
    %685 = vmatmul.mubr.bf16.gmra.mxu0 %v471
    %v686 = vpop.f32.mrf.mxu0
    %v687 = vadd.f32 %v514, %v686
    %v688 = vpop.f32.mrf.mxu0
    %v689 = vpop.f32.mrf.mxu0
    %v690 = vadd.f32 %v514, %v689
    %v691 = vpop.f32.mrf.mxu0
    %692 = vmatprep.mubr.bf16.mxu0 %v474
    %693 = vmatmul.mubr.bf16.gmra.mxu0 %v473
    %v694 = vpop.f32.mrf.mxu0
    %v695 = vadd.f32 %v514, %v694
    %v696 = vpop.f32.mrf.mxu0
    %v697 = vpop.f32.mrf.mxu0
    %v698 = vadd.f32 %v514, %v697
    %v699 = vpop.f32.mrf.mxu0
    %700 = vmatprep.mubr.bf16.mxu0 %v476
    %701 = vmatmul.mubr.bf16.gmra.mxu0 %v475
    %v702 = vpop.f32.mrf.mxu0
    %v703 = vadd.f32 %v514, %v702
    %v704 = vpop.f32.mrf.mxu0
    %v705 = vpop.f32.mrf.mxu0
    %v706 = vadd.f32 %v514, %v705
    %v707 = vpop.f32.mrf.mxu0
    %708 = vdwg.mxu0
    %v709 = vmax.f32 %v647, 0.0
    %v710 = vmax.f32 %v650, 0.0
    %v711 = vmax.f32 %v655, 0.0
    %v712 = vmax.f32 %v658, 0.0
    %v713 = vmax.f32 %v663, 0.0
    %v714 = vmax.f32 %v666, 0.0
    %v715 = vmax.f32 %v671, 0.0
    %v716 = vmax.f32 %v674, 0.0
    %v717 = vmax.f32 %v679, 0.0
    %v718 = vmax.f32 %v682, 0.0
    %v719 = vmax.f32 %v687, 0.0
    %v720 = vmax.f32 %v690, 0.0
    %v721 = vmax.f32 %v695, 0.0
    %v722 = vmax.f32 %v698, 0.0
    %v723 = vmax.f32 %v703, 0.0
    %v724 = vmax.f32 %v706, 0.0
    %v725 = vld [vmem:[%s7] sm:$0x1]
    %v726 = vpack.c.bf16 %v710, %v709
    %v727 = vpack.c.bf16 %v712, %v711
    %v728 = vpack.c.bf16 %v714, %v713
    %v729 = vpack.c.bf16 %v716, %v715
    %v730 = vpack.c.bf16 %v718, %v717
    %v731 = vpack.c.bf16 %v720, %v719
    %v732 = vpack.c.bf16 %v722, %v721
    %v733 = vpack.c.bf16 %v724, %v723
    %v734 = vld [vmem:[#allocation2] sm:$0x1]
    %736 = vset.pattern.permute.xlu0 0
    %737 = vperm.xlu0 %736, %v734
    %v738 = vpop.permute.xlu0 %737
    %v740 = vlaneseq
    %v741 = vshrl.u32 %v740, 7
    %v742 = vsub.s32 0, %v741
    %v743 = vrot.slane %v738, %v742
    %744 = vmatprep.subr.bf16.mxu0 0
    %745 = vmatpush1.bf16.xpose.msra.mxu0 %v733
    %746 = vmatprep.subr.bf16.mxu0 0
    %747 = vmatpush1.bf16.xpose.msra.mxu0 %v732
    %748 = vmatprep.subr.bf16.mxu0 0
    %749 = vmatpush1.bf16.xpose.msra.mxu0 %v731
    %750 = vmatprep.subr.bf16.mxu0 0
    %751 = vmatpush1.bf16.xpose.msra.mxu0 %v730
    %752 = vmatprep.subr.bf16.mxu0 0
    %753 = vmatpush1.bf16.xpose.msra.mxu0 %v729
    %754 = vmatprep.subr.bf16.mxu0 0
    %755 = vmatpush1.bf16.xpose.msra.mxu0 %v728
    %756 = vmatprep.subr.bf16.mxu0 0
    %757 = vmatpush1.bf16.xpose.msra.mxu0 %v727
    %758 = vmatprep.subr.bf16.mxu0 0
    %759 = vmatpush1.bf16.xpose.msra.mxu0 %v726
    %760 = vmatprep.subr.bf16.mxu0 0
    %761 = vmatpush2.bf16.xpose.msra.mxu0 0
    %762 = vmatprep.subr.bf16.mxu0 0
    %763 = vmatpush2.bf16.xpose.msra.mxu0 0
    %764 = vmatprep.subr.bf16.mxu0 0
    %765 = vmatpush2.bf16.xpose.msra.mxu0 0
    %766 = vmatprep.subr.bf16.mxu0 0
    %767 = vmatpush2.bf16.xpose.msra.mxu0 0
    %768 = vmatprep.subr.bf16.mxu0 0
    %769 = vmatpush2.bf16.xpose.msra.mxu0 0
    %770 = vmatprep.subr.bf16.mxu0 0
    %771 = vmatpush2.bf16.xpose.msra.mxu0 0
    %772 = vmatprep.subr.bf16.mxu0 0
    %773 = vmatpush2.bf16.xpose.msra.mxu0 0
    %774 = vmatprep.subr.bf16.mxu0 0
    %775 = vmatpush2.bf16.xpose.msra.mxu0 0
    %776 = vmatprep.mubr.bf16.mxu0 0
    %777 = vmatmul.mubr.bf16.gmra.mxu0 %v725
    %v778 = vpop.f32.mrf.mxu0
    %v779 = vadd.f32 %v743, %v778
    %v780 = vpop.f32.mrf.mxu0
    %v781 = vpop.f32.mrf.mxu0
    %v782 = vpop.f32.mrf.mxu0
    %783 = vdwg.mxu0
    %784 = vst [vmem:[#allocation3] sm:$0x1] %v779
    // Predicated region
    $region38: #{tpu_custom_call.1} parent=1 // pred_check
      _
    $region39: #{tpu_custom_call.1} parent=1 // pred_check_branch
      %786 = sbr.rel (0) target = $region41
    $region40: #{tpu_custom_call.1} parent=1 // pred_region
      %s788 = ssub.s32 16, 16
      %789 = vsyncadd [#allocation4], %s788
      %s791 = sshll.u32 [#allocation3], 4
      %s792 = int_to_ptr.vmem [resolvable:$true] %s791
      %794 = dma.vmem_to_hbm [thread:$0]  %s792, 16, %s9, [#allocation4]
    $region41: #{tpu_custom_call.1} parent=1 // pred_fallthru
      _
    // Predicated region
    $region42: #{tpu_custom_call.1} parent=1 // pred_check
      _
    $region43: #{tpu_custom_call.1} parent=1 // pred_check_branch
      %796 = sbr.rel (0) target = $region45
    $region44: #{tpu_custom_call.1} parent=1 // pred_region
      %797 = dma.done [#allocation4], 16
    $region45: #{tpu_custom_call.1} parent=1 // pred_fallthru
      _
    %798 = vsyncpa [#allocation4], 1

</llo_original>
